<compile_context>
chip_gen: v6e
topology: v6e:2x2x1
jax: 0.10.0
libtpu: 0.0.40
codegen_flags: <defaults>
</compile_context>

<pallas_src>
import jax
import jax.numpy as jnp
from jax.experimental import pallas as pl
from jax.experimental.pallas import tpu as pltpu


def _round_up(x, m):
    return ((x + m - 1) // m) * m


def tiny_mlp_kernel(x_ref, w1_ref, b1_ref, w2_ref, b2_ref, o_ref):
    # Cast x to the matmul dtype in-kernel (VPU cast hides under the MXU);
    # accumulate and do bias / ReLU / tanh in f32.
    x = x_ref[...].astype(w1_ref.dtype)
    h = jnp.dot(x, w1_ref[...], preferred_element_type=jnp.float32)
    h = jnp.maximum(h + b1_ref[...], 0.0)
    h = h.astype(w2_ref.dtype)
    y = jnp.dot(h, w2_ref[...], preferred_element_type=jnp.float32) + b2_ref[...]
    o_ref[...] = jnp.tanh(y).astype(o_ref.dtype)


def prepare_params(w1, b1, w2, b2, *, matmul_dtype=jnp.bfloat16):
    """One-time parameter preparation: MXU dtype for weights, f32 row biases.

    Call this once outside the per-step path so the per-call wrapper does not
    re-read / re-write the full weight set every invocation.
    """
    w1 = jnp.asarray(w1, matmul_dtype)
    w2 = jnp.asarray(w2, matmul_dtype)
    b1 = jnp.asarray(b1, jnp.float32).reshape(1, -1)
    b2 = jnp.asarray(b2, jnp.float32).reshape(1, -1)
    return w1, b1, w2, b2


def _vmem_cap_bytes():
    try:
        cap = pltpu.get_tpu_info().vmem_capacity_bytes
    except Exception:
        cap = 128 * 1024 * 1024  # conservative default if the query is unavailable
    # Leave headroom for compiler-internal scratch (tightest on v7x's 64 MiB).
    return cap - max(cap // 8, 8 * 1024 * 1024)


def tiny_mlp(x, w1, b1, w2, b2, *, block_rows=1024, matmul_dtype=jnp.bfloat16,
             out_dtype=None):
    """x: [B, N]; w1: [N, H]; b1: [.., H]; w2: [H, N]; b2: [.., N]; H = N // 4.

    Note (API contract): matmul operands run in bf16 with f32 accumulation, so
    results differ from a pure-f32 PyTorch forward by bf16 rounding only.
    """
    B, N = x.shape
    H = w1.shape[1]
    out_dtype = x.dtype if out_dtype is None else out_dtype

    # Parameter cast is a no-op if the caller already used prepare_params().
    if (w1.dtype != matmul_dtype or w2.dtype != matmul_dtype
            or b1.dtype != jnp.float32 or b2.dtype != jnp.float32
            or b1.ndim != 2 or b2.ndim != 2):
        w1, b1, w2, b2 = prepare_params(w1, b1, w2, b2, matmul_dtype=matmul_dtype)

    x_sz = jnp.dtype(x.dtype).itemsize
    w_sz = jnp.dtype(matmul_dtype).itemsize
    o_sz = jnp.dtype(out_dtype).itemsize

    def vmem_need(tb, wbuf):
        return (2 * tb * N * x_sz                 # double-buffered x tile
                + 2 * tb * N * o_sz               # double-buffered out tile
                + wbuf * 2 * N * H * w_sz         # resident W1 + W2
                + wbuf * (H + N) * 4              # resident b1 + b2 (f32)
                + tb * N * w_sz                   # in-kernel bf16 copy of x
                + tb * H * (4 + w_sz)             # h (f32) + bf16 copy of h
                + tb * N * 4)                     # y / tanh temp (f32)

    cap = _vmem_cap_bytes()

    # Batch tile selection: multiple of 16 (bf16 sublane packing), bounded
    # padding waste, shrunk until the footprint fits this generation's VMEM,
    # and >= 2 grid steps for large batches (v7x has 2 TensorCores).
    base = 16 if B >= 16 else 8
    TB = _round_up(min(block_rows, _round_up(B, base)), base)
    while TB > base and (_round_up(B, TB) - B) > TB // 2:
        TB = _round_up(max(base, TB // 2), base)
    while TB > base and vmem_need(TB, 2) > cap:
        TB = _round_up(max(base, TB // 2), base)
    if B >= 128 and _round_up(B, TB) // TB < 2:
        TB = _round_up(max(base, TB // 2), base)
    Bp = _round_up(B, TB)
    # TODO(synk): if vmem_need(base, 1) still exceeds `cap` (very large N on
    # v7x), add an inner grid axis over output columns that streams W2 tiles
    # instead of keeping both weights fully resident.

    xp = x if Bp == B else jnp.pad(x, ((0, Bp - B), (0, 0)))

    need = vmem_need(TB, 2)
    vmem_limit = int(min(cap, max(2 * need, 32 * 1024 * 1024)))
    vmem_limit = int(max(vmem_limit, min(cap, need)))

    cost = pl.CostEstimate(
        flops=4 * Bp * N * H,              # two matmuls
        transcendentals=Bp * N,            # tanh
        bytes_accessed=(Bp * N * x_sz + 2 * N * H * w_sz + (H + N) * 4
                        + Bp * N * o_sz),
    )

    def run(weight_pipeline_mode):
        wkw = ({} if weight_pipeline_mode is None
               else {"pipeline_mode": weight_pipeline_mode})
        grid_spec = pl.GridSpec(
            grid=(Bp // TB,),
            in_specs=[
                pl.BlockSpec((TB, N), lambda i: (i, 0)),          # x: batch-tiled
                pl.BlockSpec((N, H), lambda i: (0, 0), **wkw),    # W1: resident
                pl.BlockSpec((1, H), lambda i: (0, 0), **wkw),    # b1: resident
                pl.BlockSpec((H, N), lambda i: (0, 0), **wkw),    # W2: resident
                pl.BlockSpec((1, N), lambda i: (0, 0), **wkw),    # b2: resident
            ],
            out_specs=pl.BlockSpec((TB, N), lambda i: (i, 0)),
        )
        return pl.pallas_call(
            tiny_mlp_kernel,
            out_shape=jax.ShapeDtypeStruct((Bp, N), out_dtype),
            grid_spec=grid_spec,
            compiler_params=pltpu.CompilerParams(
                dimension_semantics=("parallel",),
                vmem_limit_bytes=vmem_limit,
            ),
            cost_estimate=cost,
        )(xp, w1, b1, w2, b2)

    try:
        # Resident (constant index-map) operands only need a single buffer.
        out = run(pl.Buffered(1))
    except Exception:
        out = run(None)

    return out if Bp == B else out[:B]


def init_params(key, N):
    """Deterministic init matching nn.Linear (uniform +-1/sqrt(fan_in)).

    Weights are stored pre-transposed as [in_features, out_features] so the
    kernel computes x @ W + b, matching PyTorch's x @ W.T + b.
    """
    H = N // 4
    k1, k2, k3, k4 = jax.random.split(key, 4)
    lim1 = 1.0 / jnp.sqrt(N)
    lim2 = 1.0 / jnp.sqrt(H)
    w1 = jax.random.uniform(k1, (N, H), jnp.float32, -lim1, lim1)
    b1 = jax.random.uniform(k2, (1, H), jnp.float32, -lim1, lim1)
    w2 = jax.random.uniform(k3, (H, N), jnp.float32, -lim2, lim2)
    b2 = jax.random.uniform(k4, (1, N), jnp.float32, -lim2, lim2)
    return w1, b1, w2, b2


if __name__ == "__main__":
    N = 128          # feature dim (hidden = N // 4 = 32); lane-dense output
    B = 16           # batch
    key = jax.random.PRNGKey(0)
    kx, kp = jax.random.split(key)
    x = jax.random.normal(kx, (B, N), jnp.float32)
    w1, b1, w2, b2 = init_params(kp, N)

    # One-time parameter prep (bf16 weights, f32 row biases).
    w1p, b1p, w2p, b2p = prepare_params(w1, b1, w2, b2)

    out = tiny_mlp(x, w1p, b1p, w2p, b2p)
    out = jax.block_until_ready(out)
    assert out.shape == (B, N)
    assert out.dtype == x.dtype

    # Reference matching the kernel's bf16-operand / f32-accumulate math.
    xb = x.astype(jnp.bfloat16).astype(jnp.float32)
    w1b = w1.astype(jnp.bfloat16).astype(jnp.float32)
    w2b = w2.astype(jnp.bfloat16).astype(jnp.float32)
    h_ref = jnp.maximum(xb @ w1b + b1, 0.0)
    y_ref = jnp.tanh(h_ref.astype(jnp.bfloat16).astype(jnp.float32) @ w2b + b2)
    assert jnp.allclose(out, y_ref, atol=2e-3, rtol=2e-3)

    # Sanity check against the full-precision forward (bf16 rounding only).
    h_fp = jnp.maximum(x @ w1 + b1, 0.0)
    y_fp = jnp.tanh(h_fp @ w2 + b2)
    assert jnp.allclose(out, y_fp, atol=3e-2, rtol=3e-2)

    print("KERNEL_OK")
</pallas_src>

<mosaic_0001>
module attributes {stable_mosaic.version = 11 : i64} {
  func.func @tiny_mlp_kernel(%arg0: i32, %arg1: memref<16x128xf32, #tpu.memory_space<vmem>>, %arg2: memref<128x32xbf16, #tpu.memory_space<vmem>>, %arg3: memref<1x32xf32, #tpu.memory_space<vmem>>, %arg4: memref<32x128xbf16, #tpu.memory_space<vmem>>, %arg5: memref<1x128xf32, #tpu.memory_space<vmem>>, %arg6: memref<16x128xf32, #tpu.memory_space<vmem>>) attributes {dimension_semantics = [#tpu.dimension_semantics<parallel>], iteration_bounds = array<i64: 1>, scalar_prefetch = 0 : i64, scratch_operands = 0 : i64, tpu.core_type = #tpu.core_type<tc>, window_params = [{transform_indices = @transform_0, window_bounds = array<i64: 16, 128>}, {pipeline_mode = #tpu.pipeline_mode<synchronous>, transform_indices = @transform_1, window_bounds = array<i64: 128, 32>}, {pipeline_mode = #tpu.pipeline_mode<synchronous>, transform_indices = @transform_2, window_bounds = array<i64: 1, 32>}, {pipeline_mode = #tpu.pipeline_mode<synchronous>, transform_indices = @transform_3, window_bounds = array<i64: 32, 128>}, {pipeline_mode = #tpu.pipeline_mode<synchronous>, transform_indices = @transform_4, window_bounds = array<i64: 1, 128>}, {transform_indices = @transform_5, window_bounds = array<i64: 16, 128>}]} {
    %c0 = arith.constant 0 : index
    %c0_0 = arith.constant 0 : index
    %0 = vector.load %arg1[%c0, %c0_0] : memref<16x128xf32, #tpu.memory_space<vmem>>, vector<16x128xf32>
    %1 = arith.truncf %0 : vector<16x128xf32> to vector<16x128xbf16>
    %c0_1 = arith.constant 0 : index
    %c0_2 = arith.constant 0 : index
    %2 = vector.load %arg2[%c0_1, %c0_2] : memref<128x32xbf16, #tpu.memory_space<vmem>>, vector<128x32xbf16>
    %cst = arith.constant dense<0.000000e+00> : vector<16x32xf32>
    %3 = tpu.matmul %1, %2, %cst {dimension_numbers = #tpu.dot_dimension_numbers<[1], [0], [0], [1], [0, 0, 1, 1], [], []>} : vector<16x128xbf16>, vector<128x32xbf16>, vector<16x32xf32> -> vector<16x32xf32>
    %c0_3 = arith.constant 0 : index
    %c0_4 = arith.constant 0 : index
    %4 = vector.load %arg3[%c0_3, %c0_4] : memref<1x32xf32, #tpu.memory_space<vmem>>, vector<1x32xf32>
    %5 = vector.broadcast %4 : vector<1x32xf32> to vector<16x32xf32>
    %6 = arith.addf %3, %5 : vector<16x32xf32>
    %cst_5 = arith.constant 0.000000e+00 : f32
    %7 = vector.broadcast %cst_5 : f32 to vector<16x32xf32>
    %8 = arith.maximumf %6, %7 : vector<16x32xf32>
    %9 = arith.truncf %8 : vector<16x32xf32> to vector<16x32xbf16>
    %c0_6 = arith.constant 0 : index
    %c0_7 = arith.constant 0 : index
    %10 = vector.load %arg4[%c0_6, %c0_7] : memref<32x128xbf16, #tpu.memory_space<vmem>>, vector<32x128xbf16>
    %cst_8 = arith.constant dense<0.000000e+00> : vector<16x128xf32>
    %11 = tpu.matmul %9, %10, %cst_8 {dimension_numbers = #tpu.dot_dimension_numbers<[1], [0], [0], [1], [0, 0, 1, 1], [], []>} : vector<16x32xbf16>, vector<32x128xbf16>, vector<16x128xf32> -> vector<16x128xf32>
    %c0_9 = arith.constant 0 : index
    %c0_10 = arith.constant 0 : index
    %12 = vector.load %arg5[%c0_9, %c0_10] : memref<1x128xf32, #tpu.memory_space<vmem>>, vector<1x128xf32>
    %13 = vector.broadcast %12 : vector<1x128xf32> to vector<16x128xf32>
    %14 = arith.addf %11, %13 : vector<16x128xf32>
    %15 = math.tanh %14 : vector<16x128xf32>
    %c0_11 = arith.constant 0 : index
    %c0_12 = arith.constant 0 : index
    %16 = vector.load %arg6[%c0_11, %c0_12] : memref<16x128xf32, #tpu.memory_space<vmem>>, vector<16x128xf32>
    tpu.vector_store %arg6[%c0_11, %c0_12], %15 {strides = array<i32>} : memref<16x128xf32, #tpu.memory_space<vmem>>, vector<16x128xf32>,
    return
  }
  func.func @transform_0(%arg0: i32) -> (i32, i32) {
    %c0_i32 = arith.constant 0 : i32
    %c0_i32_0 = arith.constant 0 : i32
    return %arg0, %c0_i32 : i32, i32
  }
  func.func @transform_1(%arg0: i32) -> (i32, i32) {
    %c0_i32 = arith.constant 0 : i32
    %c0_i32_0 = arith.constant 0 : i32
    %c0_i32_1 = arith.constant 0 : i32
    return %c0_i32, %c0_i32_0 : i32, i32
  }
  func.func @transform_2(%arg0: i32) -> (i32, i32) {
    %c0_i32 = arith.constant 0 : i32
    %c0_i32_0 = arith.constant 0 : i32
    %c0_i32_1 = arith.constant 0 : i32
    return %c0_i32, %c0_i32_0 : i32, i32
  }
  func.func @transform_3(%arg0: i32) -> (i32, i32) {
    %c0_i32 = arith.constant 0 : i32
    %c0_i32_0 = arith.constant 0 : i32
    %c0_i32_1 = arith.constant 0 : i32
    return %c0_i32, %c0_i32_0 : i32, i32
  }
  func.func @transform_4(%arg0: i32) -> (i32, i32) {
    %c0_i32 = arith.constant 0 : i32
    %c0_i32_0 = arith.constant 0 : i32
    %c0_i32_1 = arith.constant 0 : i32
    return %c0_i32, %c0_i32_0 : i32, i32
  }
  func.func @transform_5(%arg0: i32) -> (i32, i32) {
    %c0_i32 = arith.constant 0 : i32
    %c0_i32_0 = arith.constant 0 : i32
    return %arg0, %c0_i32 : i32, i32
  }
}

module attributes {stable_mosaic.version = 11 : i64} {
  func.func @tiny_mlp_kernel(%arg0: i32, %arg1: memref<16x128xf32, #tpu.memory_space<vmem>>, %arg2: memref<128x32xbf16, #tpu.memory_space<vmem>>, %arg3: memref<1x32xf32, #tpu.memory_space<vmem>>, %arg4: memref<32x128xbf16, #tpu.memory_space<vmem>>, %arg5: memref<1x128xf32, #tpu.memory_space<vmem>>, %arg6: memref<16x128xf32, #tpu.memory_space<vmem>>) attributes {dimension_semantics = [#tpu.dimension_semantics<parallel>], iteration_bounds = array<i64: 1>, scalar_prefetch = 0 : i64, scratch_operands = 0 : i64, tpu.core_type = #tpu.core_type<tc>, window_params = [{transform_indices = @transform_0, window_bounds = array<i64: 16, 128>}, {pipeline_mode = #tpu.pipeline_mode<synchronous>, transform_indices = @transform_1, window_bounds = array<i64: 128, 32>}, {pipeline_mode = #tpu.pipeline_mode<synchronous>, transform_indices = @transform_2, window_bounds = array<i64: 1, 32>}, {pipeline_mode = #tpu.pipeline_mode<synchronous>, transform_indices = @transform_3, window_bounds = array<i64: 32, 128>}, {pipeline_mode = #tpu.pipeline_mode<synchronous>, transform_indices = @transform_4, window_bounds = array<i64: 1, 128>}, {transform_indices = @transform_5, window_bounds = array<i64: 16, 128>}]} {
    %c0 = arith.constant 0 : index
    %c0_0 = arith.constant 0 : index
    %0 = vector.load %arg1[%c0, %c0_0] : memref<16x128xf32, #tpu.memory_space<vmem>>, vector<16x128xf32>
    %1 = arith.truncf %0 : vector<16x128xf32> to vector<16x128xbf16>
    %c0_1 = arith.constant 0 : index
    %c0_2 = arith.constant 0 : index
    %2 = vector.load %arg2[%c0_1, %c0_2] : memref<128x32xbf16, #tpu.memory_space<vmem>>, vector<128x32xbf16>
    %cst = arith.constant dense<0.000000e+00> : vector<16x32xf32>
    %3 = tpu.matmul %1, %2, %cst {dimension_numbers = #tpu.dot_dimension_numbers<[1], [0], [0], [1], [0, 0, 1, 1], [], []>} : vector<16x128xbf16>, vector<128x32xbf16>, vector<16x32xf32> -> vector<16x32xf32>
    %c0_3 = arith.constant 0 : index
    %c0_4 = arith.constant 0 : index
    %4 = vector.load %arg3[%c0_3, %c0_4] : memref<1x32xf32, #tpu.memory_space<vmem>>, vector<1x32xf32>
    %5 = vector.broadcast %4 : vector<1x32xf32> to vector<16x32xf32>
    %6 = arith.addf %3, %5 : vector<16x32xf32>
    %cst_5 = arith.constant 0.000000e+00 : f32
    %7 = vector.broadcast %cst_5 : f32 to vector<16x32xf32>
    %8 = arith.maximumf %6, %7 : vector<16x32xf32>
    %9 = arith.truncf %8 : vector<16x32xf32> to vector<16x32xbf16>
    %c0_6 = arith.constant 0 : index
    %c0_7 = arith.constant 0 : index
    %10 = vector.load %arg4[%c0_6, %c0_7] : memref<32x128xbf16, #tpu.memory_space<vmem>>, vector<32x128xbf16>
    %cst_8 = arith.constant dense<0.000000e+00> : vector<16x128xf32>
    %11 = tpu.matmul %9, %10, %cst_8 {dimension_numbers = #tpu.dot_dimension_numbers<[1], [0], [0], [1], [0, 0, 1, 1], [], []>} : vector<16x32xbf16>, vector<32x128xbf16>, vector<16x128xf32> -> vector<16x128xf32>
    %c0_9 = arith.constant 0 : index
    %c0_10 = arith.constant 0 : index
    %12 = vector.load %arg5[%c0_9, %c0_10] : memref<1x128xf32, #tpu.memory_space<vmem>>, vector<1x128xf32>
    %13 = vector.broadcast %12 : vector<1x128xf32> to vector<16x128xf32>
    %14 = arith.addf %11, %13 : vector<16x128xf32>
    %15 = math.tanh %14 : vector<16x128xf32>
    %c0_11 = arith.constant 0 : index
    %c0_12 = arith.constant 0 : index
    %16 = vector.load %arg6[%c0_11, %c0_12] : memref<16x128xf32, #tpu.memory_space<vmem>>, vector<16x128xf32>
    tpu.vector_store %arg6[%c0_11, %c0_12], %15 {strides = array<i32>} : memref<16x128xf32, #tpu.memory_space<vmem>>, vector<16x128xf32>,
    return
  }
  func.func @transform_0(%arg0: i32) -> (i32, i32) {
    %c0_i32 = arith.constant 0 : i32
    %c0_i32_0 = arith.constant 0 : i32
    return %arg0, %c0_i32 : i32, i32
  }
  func.func @transform_1(%arg0: i32) -> (i32, i32) {
    %c0_i32 = arith.constant 0 : i32
    %c0_i32_0 = arith.constant 0 : i32
    %c0_i32_1 = arith.constant 0 : i32
    return %c0_i32, %c0_i32_0 : i32, i32
  }
  func.func @transform_2(%arg0: i32) -> (i32, i32) {
    %c0_i32 = arith.constant 0 : i32
    %c0_i32_0 = arith.constant 0 : i32
    %c0_i32_1 = arith.constant 0 : i32
    return %c0_i32, %c0_i32_0 : i32, i32
  }
  func.func @transform_3(%arg0: i32) -> (i32, i32) {
    %c0_i32 = arith.constant 0 : i32
    %c0_i32_0 = arith.constant 0 : i32
    %c0_i32_1 = arith.constant 0 : i32
    return %c0_i32, %c0_i32_0 : i32, i32
  }
  func.func @transform_4(%arg0: i32) -> (i32, i32) {
    %c0_i32 = arith.constant 0 : i32
    %c0_i32_0 = arith.constant 0 : i32
    %c0_i32_1 = arith.constant 0 : i32
    return %c0_i32, %c0_i32_0 : i32, i32
  }
  func.func @transform_5(%arg0: i32) -> (i32, i32) {
    %c0_i32 = arith.constant 0 : i32
    %c0_i32_0 = arith.constant 0 : i32
    return %arg0, %c0_i32 : i32, i32
  }
}

</mosaic_0001>

<llo_original>
// kernel: tpu_custom_call.1
$region0: #{tpu_custom_call.1}
  #allocation0 [shape = 'u32[]', space=smem, size = 0x4, offset = 0x4, fixed_abs, tag = 'smem constant byte address 0x4 - core index']
  #allocation1 [shape = 'u32[144,128]{1,0:T(1,128)}', space=vmem, size = 0x12000, scoped, tag = 'internal scratch']
  %s0 = inlined_call_operand.vmem [shape: f32[16,128], index: 0, kind: input, shape index: {}]
  %s1 = inlined_call_operand.vmem [shape: bf16[128,32], index: 1, kind: input, shape index: {}]
  %s2 = inlined_call_operand.vmem [shape: f32[1,32], index: 2, kind: input, shape index: {}]
  %s3 = inlined_call_operand.vmem [shape: bf16[32,128], index: 3, kind: input, shape index: {}]
  %s4 = inlined_call_operand.vmem [shape: f32[1,128], index: 4, kind: input, shape index: {}]
  %s5 = inlined_call_operand.hbm [shape: f32[16,128], index: 5, kind: output, shape index: {}]
  %s6 = sld [smem:[#allocation0]]
  $region30: #{tpu_custom_call.1} parent=0
    _
  %s8 = ssub.s32 1, %s6
  %s9 = scalar_select 0, %s8, %s6
  $region1: #{tpu_custom_call.1} parent=0
    #allocation2 [shape = 'u8[8192]{0}', space=vmem, size = 0x2000, scoped, tag = 'output window, operand 0, single buffered']
    #allocation3 [shape = 's32[1]{0}', space=sflag, size = 0x4, scoped, tag = 'scoped memory for tpu_custom_call.1']
    %10 = vsyncpa [#allocation3], 0
    // Predicated region
    $region2: #{tpu_custom_call.1} parent=1 // pred_check
      _
    $region3: #{tpu_custom_call.1} parent=1 // pred_check_branch
      %12 = sbr.rel (0) target = $region5
    $region4: #{tpu_custom_call.1} parent=1 // pred_region
      _
    $region5: #{tpu_custom_call.1} parent=1 // pred_fallthru
      _
    // Predicated region
    $region6: #{tpu_custom_call.1} parent=1 // pred_check
      _
    $region7: #{tpu_custom_call.1} parent=1 // pred_check_branch
      %14 = sbr.rel (0) target = $region9
    $region8: #{tpu_custom_call.1} parent=1 // pred_region
      _
    $region9: #{tpu_custom_call.1} parent=1 // pred_fallthru
      _
    // Predicated region
    $region10: #{tpu_custom_call.1} parent=1 // pred_check
      _
    $region11: #{tpu_custom_call.1} parent=1 // pred_check_branch
      %16 = sbr.rel (0) target = $region13
    $region12: #{tpu_custom_call.1} parent=1 // pred_region
      _
    $region13: #{tpu_custom_call.1} parent=1 // pred_fallthru
      _
    // Predicated region
    $region14: #{tpu_custom_call.1} parent=1 // pred_check
      _
    $region15: #{tpu_custom_call.1} parent=1 // pred_check_branch
      %18 = sbr.rel (0) target = $region17
    $region16: #{tpu_custom_call.1} parent=1 // pred_region
      _
    $region17: #{tpu_custom_call.1} parent=1 // pred_fallthru
      _
    // Predicated region
    $region18: #{tpu_custom_call.1} parent=1 // pred_check
      _
    $region19: #{tpu_custom_call.1} parent=1 // pred_check_branch
      %20 = sbr.rel (0) target = $region21
    $region20: #{tpu_custom_call.1} parent=1 // pred_region
      _
    $region21: #{tpu_custom_call.1} parent=1 // pred_fallthru
      _
    %v22 = vld [vmem:[%s0] sm:$0xff]
    %v23 = vld [vmem:[%s0 + $0x8] sm:$0xff]
    %v24 = vpack.c.bf16 %v23, %v22
    %v25 = vld [vmem:[%s1] sm:$0xf]
    %v26 = vld [vmem:[%s1 + $0x4] sm:$0xf]
    %v27 = vld [vmem:[%s1 + $0x8] sm:$0xf]
    %v28 = vld [vmem:[%s1 + $0xc] sm:$0xf]
    %v29 = vld [vmem:[%s1 + $0x10] sm:$0xf]
    %v30 = vld [vmem:[%s1 + $0x14] sm:$0xf]
    %v31 = vld [vmem:[%s1 + $0x18] sm:$0xf]
    %v32 = vld [vmem:[%s1 + $0x1c] sm:$0xf]
    %v33 = vld [vmem:[%s1 + $0x20] sm:$0xf]
    %v34 = vld [vmem:[%s1 + $0x24] sm:$0xf]
    %v35 = vld [vmem:[%s1 + $0x28] sm:$0xf]
    %v36 = vld [vmem:[%s1 + $0x2c] sm:$0xf]
    %v37 = vld [vmem:[%s1 + $0x30] sm:$0xf]
    %v38 = vld [vmem:[%s1 + $0x34] sm:$0xf]
    %v39 = vld [vmem:[%s1 + $0x38] sm:$0xf]
    %v40 = vld [vmem:[%s1 + $0x3c] sm:$0xf]
    %v41 = vld [vmem:[%s2] sm:$0x1]
    %v43 = vlaneseq
    %v44 = vshrl.u32 %v43, 7
    %v45 = vsub.s32 0, %v44
    %v46 = vrot.slane %v41, %v45
    %v64 = vunpack.c.l.b16 %v25
    %v65 = vunpack.c.l.b16 %v26
    %v66 = vunpack.c.l.b16 %v27
    %v67 = vunpack.c.l.b16 %v28
    %v68 = vunpack.c.l.b16 %v29
    %v69 = vunpack.c.l.b16 %v30
    %v70 = vunpack.c.l.b16 %v31
    %v71 = vunpack.c.l.b16 %v32
    %v72 = vunpack.c.l.b16 %v33
    %v73 = vunpack.c.l.b16 %v34
    %v74 = vunpack.c.l.b16 %v35
    %v75 = vunpack.c.l.b16 %v36
    %v76 = vunpack.c.l.b16 %v37
    %v77 = vunpack.c.l.b16 %v38
    %v78 = vunpack.c.l.b16 %v39
    %v79 = vunpack.c.l.b16 %v40
    %v80 = vpack.c.b16 %v65, %v64
    %v81 = vpack.c.b16 %v67, %v66
    %v82 = vpack.c.b16 %v69, %v68
    %v83 = vpack.c.b16 %v71, %v70
    %v84 = vpack.c.b16 %v73, %v72
    %v85 = vpack.c.b16 %v75, %v74
    %v86 = vpack.c.b16 %v77, %v76
    %v87 = vpack.c.b16 %v79, %v78
    %96 = vmatprep.subr.bf16.mxu0 0
    %97 = vmatpush1.bf16.msra.mxu0 %v87
    %98 = vmatprep.subr.bf16.mxu0 0
    %99 = vmatpush1.bf16.msra.mxu0 %v86
    %100 = vmatprep.subr.bf16.mxu0 0
    %101 = vmatpush1.bf16.msra.mxu0 %v85
    %102 = vmatprep.subr.bf16.mxu0 0
    %103 = vmatpush1.bf16.msra.mxu0 %v84
    %104 = vmatprep.subr.bf16.mxu0 0
    %105 = vmatpush1.bf16.msra.mxu0 %v83
    %106 = vmatprep.subr.bf16.mxu0 0
    %107 = vmatpush1.bf16.msra.mxu0 %v82
    %108 = vmatprep.subr.bf16.mxu0 0
    %109 = vmatpush1.bf16.msra.mxu0 %v81
    %110 = vmatprep.subr.bf16.mxu0 0
    %111 = vmatpush1.bf16.msra.mxu0 %v80
    %112 = vmatprep.subr.bf16.mxu0 0
    %113 = vmatpush2.bf16.msra.mxu0 0
    %114 = vmatprep.subr.bf16.mxu0 0
    %115 = vmatpush2.bf16.msra.mxu0 0
    %116 = vmatprep.subr.bf16.mxu0 0
    %117 = vmatpush2.bf16.msra.mxu0 0
    %118 = vmatprep.subr.bf16.mxu0 0
    %119 = vmatpush2.bf16.msra.mxu0 0
    %120 = vmatprep.subr.bf16.mxu0 0
    %121 = vmatpush2.bf16.msra.mxu0 0
    %122 = vmatprep.subr.bf16.mxu0 0
    %123 = vmatpush2.bf16.msra.mxu0 0
    %124 = vmatprep.subr.bf16.mxu0 0
    %125 = vmatpush2.bf16.msra.mxu0 0
    %126 = vmatprep.subr.bf16.mxu0 0
    %127 = vmatpush2.bf16.msra.mxu0 0
    %128 = vmatprep.mubr.bf16.mxu0 0
    %129 = vmatmul.mubr.bf16.gmra.mxu0 %v24
    %v130 = vpop.f32.mrf.mxu0
    %v131 = vadd.f32 %v46, %v130
    %v132 = vpop.f32.mrf.mxu0
    %v133 = vpop.f32.mrf.mxu0
    %v134 = vadd.f32 %v46, %v133
    %v135 = vpop.f32.mrf.mxu0
    %136 = vdwg.mxu0
    %v137 = vmax.f32 %v131, 0.0
    %v138 = vmax.f32 %v134, 0.0
    %v139 = vpack.c.bf16 %v138, %v137
    %v140 = vld [vmem:[%s3] sm:$0xf]
    %v141 = vld [vmem:[%s3 + $0x4] sm:$0xf]
    %v142 = vld [vmem:[%s3 + $0x8] sm:$0xf]
    %v143 = vld [vmem:[%s3 + $0xc] sm:$0xf]
    %v144 = vld [vmem:[%s4] sm:$0x1]
    %v146 = vlaneseq
    %v147 = vshrl.u32 %v146, 7
    %v148 = vsub.s32 0, %v147
    %v149 = vrot.slane %v144, %v148
    %v155 = vunpack.c.l.b16 %v140
    %v156 = vunpack.c.l.b16 %v141
    %v157 = vunpack.c.l.b16 %v142
    %v158 = vunpack.c.l.b16 %v143
    %v159 = vpack.c.b16 %v156, %v155
    %v160 = vpack.c.b16 %v158, %v157
    %vm163 = vcmask 261120
    %v165 = vsel %vm163, %v139, 0
    %167 = vmatprep.subr.bf16.mxu0 0
    %168 = vmatpush1.bf16.msra.mxu0 0
    %169 = vmatprep.subr.bf16.mxu0 0
    %170 = vmatpush1.bf16.msra.mxu0 0
    %171 = vmatprep.subr.bf16.mxu0 0
    %172 = vmatpush1.bf16.msra.mxu0 0
    %173 = vmatprep.subr.bf16.mxu0 0
    %174 = vmatpush1.bf16.msra.mxu0 0
    %175 = vmatprep.subr.bf16.mxu0 0
    %176 = vmatpush1.bf16.msra.mxu0 0
    %177 = vmatprep.subr.bf16.mxu0 0
    %178 = vmatpush1.bf16.msra.mxu0 0
    %179 = vmatprep.subr.bf16.mxu0 0
    %180 = vmatpush1.bf16.msra.mxu0 %v160
    %181 = vmatprep.subr.bf16.mxu0 0
    %182 = vmatpush1.bf16.msra.mxu0 %v159
    %183 = vmatprep.subr.bf16.mxu0 0
    %184 = vmatpush2.bf16.msra.mxu0 0
    %185 = vmatprep.subr.bf16.mxu0 0
    %186 = vmatpush2.bf16.msra.mxu0 0
    %187 = vmatprep.subr.bf16.mxu0 0
    %188 = vmatpush2.bf16.msra.mxu0 0
    %189 = vmatprep.subr.bf16.mxu0 0
    %190 = vmatpush2.bf16.msra.mxu0 0
    %191 = vmatprep.subr.bf16.mxu0 0
    %192 = vmatpush2.bf16.msra.mxu0 0
    %193 = vmatprep.subr.bf16.mxu0 0
    %194 = vmatpush2.bf16.msra.mxu0 0
    %195 = vmatprep.subr.bf16.mxu0 0
    %196 = vmatpush2.bf16.msra.mxu0 0
    %197 = vmatprep.subr.bf16.mxu0 0
    %198 = vmatpush2.bf16.msra.mxu0 0
    %199 = vmatprep.mubr.bf16.mxu0 0
    %200 = vmatmul.mubr.bf16.gmra.mxu0 %v165
    %v201 = vpop.f32.mrf.mxu0
    %v202 = vadd.f32 %v149, %v201
    %v203 = vpop.f32.mrf.mxu0
    %v204 = vpop.f32.mrf.mxu0
    %v205 = vadd.f32 %v149, %v204
    %v206 = vpop.f32.mrf.mxu0
    %207 = vdwg.mxu0
    %v208 = vtanh.pop %v202
    %v209 = vtanh.pop %v205
    %210 = vst [vmem:[#allocation2] sm:$0xff] %v208
    %211 = vst [vmem:[#allocation2 + $0x8] sm:$0xff] %v209
    // Predicated region
    $region22: #{tpu_custom_call.1} parent=1 // pred_check
      _
    $region23: #{tpu_custom_call.1} parent=1 // pred_check_branch
      %213 = sbr.rel (0) target = $region25
    $region24: #{tpu_custom_call.1} parent=1 // pred_region
      %s215 = ssub.s32 256, 256
      %216 = vsyncadd [#allocation3], %s215
      %s217 = sshll.u32 [#allocation2], 4
      %s218 = int_to_ptr.vmem [resolvable:$true] %s217
      %223 = dma.vmem_to_hbm [thread:$0]  %s218, 256, %s5, [#allocation3], 128, 128, 8
    $region25: #{tpu_custom_call.1} parent=1 // pred_fallthru
      _
    // Predicated region
    $region26: #{tpu_custom_call.1} parent=1 // pred_check
      _
    $region27: #{tpu_custom_call.1} parent=1 // pred_check_branch
      %225 = sbr.rel (0) target = $region29
    $region28: #{tpu_custom_call.1} parent=1 // pred_region
      %226 = dma.done [#allocation3], 256
    $region29: #{tpu_custom_call.1} parent=1 // pred_fallthru
      _
    %227 = vsyncpa [#allocation3], 1

// kernel: tpu_custom_call.1
$region0: #{tpu_custom_call.1}
  #allocation0 [shape = 'u32[]', space=smem, size = 0x4, offset = 0x4, fixed_abs, tag = 'smem constant byte address 0x4 - core index']
  #allocation1 [shape = 'u32[144,128]{1,0:T(1,128)}', space=vmem, size = 0x12000, scoped, tag = 'internal scratch']
  %s0 = inlined_call_operand.vmem [shape: f32[16,128], index: 0, kind: input, shape index: {}]
  %s1 = inlined_call_operand.vmem [shape: bf16[128,32], index: 1, kind: input, shape index: {}]
  %s2 = inlined_call_operand.vmem [shape: f32[1,32], index: 2, kind: input, shape index: {}]
  %s3 = inlined_call_operand.vmem [shape: bf16[32,128], index: 3, kind: input, shape index: {}]
  %s4 = inlined_call_operand.vmem [shape: f32[1,128], index: 4, kind: input, shape index: {}]
  %s5 = inlined_call_operand.hbm [shape: f32[16,128], index: 5, kind: output, shape index: {}]
  %s6 = sld [smem:[#allocation0]]
  $region30: #{tpu_custom_call.1} parent=0
    _
  %s8 = ssub.s32 1, %s6
  %s9 = scalar_select 0, %s8, %s6
  $region1: #{tpu_custom_call.1} parent=0
    #allocation2 [shape = 'u8[8192]{0}', space=vmem, size = 0x2000, scoped, tag = 'output window, operand 0, single buffered']
    #allocation3 [shape = 's32[1]{0}', space=sflag, size = 0x4, scoped, tag = 'scoped memory for tpu_custom_call.1']
    %10 = vsyncpa [#allocation3], 0
    // Predicated region
    $region2: #{tpu_custom_call.1} parent=1 // pred_check
      _
    $region3: #{tpu_custom_call.1} parent=1 // pred_check_branch
      %12 = sbr.rel (0) target = $region5
    $region4: #{tpu_custom_call.1} parent=1 // pred_region
      _
    $region5: #{tpu_custom_call.1} parent=1 // pred_fallthru
      _
    // Predicated region
    $region6: #{tpu_custom_call.1} parent=1 // pred_check
      _
    $region7: #{tpu_custom_call.1} parent=1 // pred_check_branch
      %14 = sbr.rel (0) target = $region9
    $region8: #{tpu_custom_call.1} parent=1 // pred_region
      _
    $region9: #{tpu_custom_call.1} parent=1 // pred_fallthru
      _
    // Predicated region
    $region10: #{tpu_custom_call.1} parent=1 // pred_check
      _
    $region11: #{tpu_custom_call.1} parent=1 // pred_check_branch
      %16 = sbr.rel (0) target = $region13
    $region12: #{tpu_custom_call.1} parent=1 // pred_region
      _
    $region13: #{tpu_custom_call.1} parent=1 // pred_fallthru
      _
    // Predicated region
    $region14: #{tpu_custom_call.1} parent=1 // pred_check
      _
    $region15: #{tpu_custom_call.1} parent=1 // pred_check_branch
      %18 = sbr.rel (0) target = $region17
    $region16: #{tpu_custom_call.1} parent=1 // pred_region
      _
    $region17: #{tpu_custom_call.1} parent=1 // pred_fallthru
      _
    // Predicated region
    $region18: #{tpu_custom_call.1} parent=1 // pred_check
      _
    $region19: #{tpu_custom_call.1} parent=1 // pred_check_branch
      %20 = sbr.rel (0) target = $region21
    $region20: #{tpu_custom_call.1} parent=1 // pred_region
      _
    $region21: #{tpu_custom_call.1} parent=1 // pred_fallthru
      _
    %v22 = vld [vmem:[%s0] sm:$0xff]
    %v23 = vld [vmem:[%s0 + $0x8] sm:$0xff]
    %v24 = vpack.c.bf16 %v23, %v22
    %v25 = vld [vmem:[%s1] sm:$0xf]
    %v26 = vld [vmem:[%s1 + $0x4] sm:$0xf]
    %v27 = vld [vmem:[%s1 + $0x8] sm:$0xf]
    %v28 = vld [vmem:[%s1 + $0xc] sm:$0xf]
    %v29 = vld [vmem:[%s1 + $0x10] sm:$0xf]
    %v30 = vld [vmem:[%s1 + $0x14] sm:$0xf]
    %v31 = vld [vmem:[%s1 + $0x18] sm:$0xf]
    %v32 = vld [vmem:[%s1 + $0x1c] sm:$0xf]
    %v33 = vld [vmem:[%s1 + $0x20] sm:$0xf]
    %v34 = vld [vmem:[%s1 + $0x24] sm:$0xf]
    %v35 = vld [vmem:[%s1 + $0x28] sm:$0xf]
    %v36 = vld [vmem:[%s1 + $0x2c] sm:$0xf]
    %v37 = vld [vmem:[%s1 + $0x30] sm:$0xf]
    %v38 = vld [vmem:[%s1 + $0x34] sm:$0xf]
    %v39 = vld [vmem:[%s1 + $0x38] sm:$0xf]
    %v40 = vld [vmem:[%s1 + $0x3c] sm:$0xf]
    %v41 = vld [vmem:[%s2] sm:$0x1]
    %v43 = vlaneseq
    %v44 = vshrl.u32 %v43, 7
    %v45 = vsub.s32 0, %v44
    %v46 = vrot.slane %v41, %v45
    %v64 = vunpack.c.l.b16 %v25
    %v65 = vunpack.c.l.b16 %v26
    %v66 = vunpack.c.l.b16 %v27
    %v67 = vunpack.c.l.b16 %v28
    %v68 = vunpack.c.l.b16 %v29
    %v69 = vunpack.c.l.b16 %v30
    %v70 = vunpack.c.l.b16 %v31
    %v71 = vunpack.c.l.b16 %v32
    %v72 = vunpack.c.l.b16 %v33
    %v73 = vunpack.c.l.b16 %v34
    %v74 = vunpack.c.l.b16 %v35
    %v75 = vunpack.c.l.b16 %v36
    %v76 = vunpack.c.l.b16 %v37
    %v77 = vunpack.c.l.b16 %v38
    %v78 = vunpack.c.l.b16 %v39
    %v79 = vunpack.c.l.b16 %v40
    %v80 = vpack.c.b16 %v65, %v64
    %v81 = vpack.c.b16 %v67, %v66
    %v82 = vpack.c.b16 %v69, %v68
    %v83 = vpack.c.b16 %v71, %v70
    %v84 = vpack.c.b16 %v73, %v72
    %v85 = vpack.c.b16 %v75, %v74
    %v86 = vpack.c.b16 %v77, %v76
    %v87 = vpack.c.b16 %v79, %v78
    %96 = vmatprep.subr.bf16.mxu0 0
    %97 = vmatpush1.bf16.msra.mxu0 %v87
    %98 = vmatprep.subr.bf16.mxu0 0
    %99 = vmatpush1.bf16.msra.mxu0 %v86
    %100 = vmatprep.subr.bf16.mxu0 0
    %101 = vmatpush1.bf16.msra.mxu0 %v85
    %102 = vmatprep.subr.bf16.mxu0 0
    %103 = vmatpush1.bf16.msra.mxu0 %v84
    %104 = vmatprep.subr.bf16.mxu0 0
    %105 = vmatpush1.bf16.msra.mxu0 %v83
    %106 = vmatprep.subr.bf16.mxu0 0
    %107 = vmatpush1.bf16.msra.mxu0 %v82
    %108 = vmatprep.subr.bf16.mxu0 0
    %109 = vmatpush1.bf16.msra.mxu0 %v81
    %110 = vmatprep.subr.bf16.mxu0 0
    %111 = vmatpush1.bf16.msra.mxu0 %v80
    %112 = vmatprep.subr.bf16.mxu0 0
    %113 = vmatpush2.bf16.msra.mxu0 0
    %114 = vmatprep.subr.bf16.mxu0 0
    %115 = vmatpush2.bf16.msra.mxu0 0
    %116 = vmatprep.subr.bf16.mxu0 0
    %117 = vmatpush2.bf16.msra.mxu0 0
    %118 = vmatprep.subr.bf16.mxu0 0
    %119 = vmatpush2.bf16.msra.mxu0 0
    %120 = vmatprep.subr.bf16.mxu0 0
    %121 = vmatpush2.bf16.msra.mxu0 0
    %122 = vmatprep.subr.bf16.mxu0 0
    %123 = vmatpush2.bf16.msra.mxu0 0
    %124 = vmatprep.subr.bf16.mxu0 0
    %125 = vmatpush2.bf16.msra.mxu0 0
    %126 = vmatprep.subr.bf16.mxu0 0
    %127 = vmatpush2.bf16.msra.mxu0 0
    %128 = vmatprep.mubr.bf16.mxu0 0
    %129 = vmatmul.mubr.bf16.gmra.mxu0 %v24
    %v130 = vpop.f32.mrf.mxu0
    %v131 = vadd.f32 %v46, %v130
    %v132 = vpop.f32.mrf.mxu0
    %v133 = vpop.f32.mrf.mxu0
    %v134 = vadd.f32 %v46, %v133
    %v135 = vpop.f32.mrf.mxu0
    %136 = vdwg.mxu0
    %v137 = vmax.f32 %v131, 0.0
    %v138 = vmax.f32 %v134, 0.0
    %v139 = vpack.c.bf16 %v138, %v137
    %v140 = vld [vmem:[%s3] sm:$0xf]
    %v141 = vld [vmem:[%s3 + $0x4] sm:$0xf]
    %v142 = vld [vmem:[%s3 + $0x8] sm:$0xf]
    %v143 = vld [vmem:[%s3 + $0xc] sm:$0xf]
    %v144 = vld [vmem:[%s4] sm:$0x1]
    %v146 = vlaneseq
    %v147 = vshrl.u32 %v146, 7
    %v148 = vsub.s32 0, %v147
    %v149 = vrot.slane %v144, %v148
    %v155 = vunpack.c.l.b16 %v140
    %v156 = vunpack.c.l.b16 %v141
    %v157 = vunpack.c.l.b16 %v142
    %v158 = vunpack.c.l.b16 %v143
    %v159 = vpack.c.b16 %v156, %v155
    %v160 = vpack.c.b16 %v158, %v157
    %vm163 = vcmask 261120
    %v165 = vsel %vm163, %v139, 0
    %167 = vmatprep.subr.bf16.mxu0 0
    %168 = vmatpush1.bf16.msra.mxu0 0
    %169 = vmatprep.subr.bf16.mxu0 0
    %170 = vmatpush1.bf16.msra.mxu0 0
    %171 = vmatprep.subr.bf16.mxu0 0
    %172 = vmatpush1.bf16.msra.mxu0 0
    %173 = vmatprep.subr.bf16.mxu0 0
    %174 = vmatpush1.bf16.msra.mxu0 0
    %175 = vmatprep.subr.bf16.mxu0 0
    %176 = vmatpush1.bf16.msra.mxu0 0
    %177 = vmatprep.subr.bf16.mxu0 0
    %178 = vmatpush1.bf16.msra.mxu0 0
    %179 = vmatprep.subr.bf16.mxu0 0
    %180 = vmatpush1.bf16.msra.mxu0 %v160
    %181 = vmatprep.subr.bf16.mxu0 0
    %182 = vmatpush1.bf16.msra.mxu0 %v159
    %183 = vmatprep.subr.bf16.mxu0 0
    %184 = vmatpush2.bf16.msra.mxu0 0
    %185 = vmatprep.subr.bf16.mxu0 0
    %186 = vmatpush2.bf16.msra.mxu0 0
    %187 = vmatprep.subr.bf16.mxu0 0
    %188 = vmatpush2.bf16.msra.mxu0 0
    %189 = vmatprep.subr.bf16.mxu0 0
    %190 = vmatpush2.bf16.msra.mxu0 0
    %191 = vmatprep.subr.bf16.mxu0 0
    %192 = vmatpush2.bf16.msra.mxu0 0
    %193 = vmatprep.subr.bf16.mxu0 0
    %194 = vmatpush2.bf16.msra.mxu0 0
    %195 = vmatprep.subr.bf16.mxu0 0
    %196 = vmatpush2.bf16.msra.mxu0 0
    %197 = vmatprep.subr.bf16.mxu0 0
    %198 = vmatpush2.bf16.msra.mxu0 0
    %199 = vmatprep.mubr.bf16.mxu0 0
    %200 = vmatmul.mubr.bf16.gmra.mxu0 %v165
    %v201 = vpop.f32.mrf.mxu0
    %v202 = vadd.f32 %v149, %v201
    %v203 = vpop.f32.mrf.mxu0
    %v204 = vpop.f32.mrf.mxu0
    %v205 = vadd.f32 %v149, %v204
    %v206 = vpop.f32.mrf.mxu0
    %207 = vdwg.mxu0
    %v208 = vtanh.pop %v202
    %v209 = vtanh.pop %v205
    %210 = vst [vmem:[#allocation2] sm:$0xff] %v208
    %211 = vst [vmem:[#allocation2 + $0x8] sm:$0xff] %v209
    // Predicated region
    $region22: #{tpu_custom_call.1} parent=1 // pred_check
      _
    $region23: #{tpu_custom_call.1} parent=1 // pred_check_branch
      %213 = sbr.rel (0) target = $region25
    $region24: #{tpu_custom_call.1} parent=1 // pred_region
      %s215 = ssub.s32 256, 256
      %216 = vsyncadd [#allocation3], %s215
      %s217 = sshll.u32 [#allocation2], 4
      %s218 = int_to_ptr.vmem [resolvable:$true] %s217
      %223 = dma.vmem_to_hbm [thread:$0]  %s218, 256, %s5, [#allocation3], 128, 128, 8
    $region25: #{tpu_custom_call.1} parent=1 // pred_fallthru
      _
    // Predicated region
    $region26: #{tpu_custom_call.1} parent=1 // pred_check
      _
    $region27: #{tpu_custom_call.1} parent=1 // pred_check_branch
      %225 = sbr.rel (0) target = $region29
    $region28: #{tpu_custom_call.1} parent=1 // pred_region
      %226 = dma.done [#allocation3], 256
    $region29: #{tpu_custom_call.1} parent=1 // pred_fallthru
      _
    %227 = vsyncpa [#allocation3], 1

</llo_original>
